<compile_context>
chip_gen: v6e
topology: v6e:2x2x1
jax: 0.10.0
libtpu: 0.0.40
codegen_flags: <defaults>
</compile_context>

<pallas_src>
import functools

import jax
import jax.numpy as jnp
from jax.experimental import pallas as pl
from jax.experimental.pallas import tpu as pltpu


def _fused_conv_bn_relu_kernel(x_ref, w_ref, gb_ref, o_ref, *,
                               W, Cout, eps, inv_count):
    """Fused dilated conv + training-mode BatchNorm + ReLU (single invocation).

    x_ref  : (N*H, Kc)      bf16  K row-shifted padded slices per output row,
                                  flattened onto the contraction axis (lane-padded).
    w_ref  : (Kc, W*Cout)   bf16  block-Toeplitz conv weights (zero-padded rows).
    gb_ref : (2, W*Cout)    f32   row 0 = gamma, row 1 = beta (tiled over W groups).
    o_ref  : (N*H, W*Cout)  f32   lane-dense output, written exactly once.
    """
    WC = W * Cout

    # ---- conv: ONE aligned MXU matmul, f32 accumulation -------------------------
    acc = jnp.dot(x_ref[...], w_ref[...], preferred_element_type=jnp.float32)
    # NOTE: conv bias intentionally omitted — the BN batch-mean subtraction below
    # cancels any per-channel bias exactly on the activation path.

    # ---- BatchNorm2d batch statistics (training mode) ---------------------------
    def lane_group_allreduce(v):
        # v: (1, WC). After log2(WC/Cout) roll+add steps every lane holds the sum
        # over all lanes with the same channel index (lane mod Cout), i.e. the
        # per-channel total already broadcast back to the lane-dense pattern.
        sh = WC // 2
        while sh >= Cout:                       # static Python loop; XLU rolls
            v = v + pltpu.roll(v, sh, axis=1)
            sh //= 2
        return v

    s1 = lane_group_allreduce(jnp.sum(acc, axis=0, keepdims=True))
    mean = s1 * inv_count                                   # (1, WC)
    diff = acc - mean
    s2 = lane_group_allreduce(jnp.sum(diff * diff, axis=0, keepdims=True))
    var = s2 * inv_count                                    # biased variance

    scale = gb_ref[0:1, :] * jax.lax.rsqrt(var + eps)       # gamma / sqrt(var+eps)
    shift = gb_ref[1:2, :] - mean * scale                   # beta - mean*scale
    o_ref[...] = jnp.maximum(acc * scale + shift, 0.0)      # dense, unmasked stores


def dilated_conv_forward(x_nchw, weight, bias, gamma, beta, *,
                         dilation=1, eps=1e-5, conv_dtype=jnp.bfloat16):
    """Forward pass of dilatedConv (conv -> BatchNorm2d(train) -> ReLU).

    x_nchw : (N, Cin, H, W) f32;  weight : (Cout, Cin, K, K) (PyTorch layout);
    bias   : (Cout,) — mathematical no-op on the activations (cancelled by BN mean);
    gamma, beta : (Cout,) BN affine parameters.
    """
    N, Cin, H, W = x_nchw.shape
    Cout, Cin2, K, K2 = weight.shape
    assert Cin2 == Cin and K2 == K
    assert K % 2 == 1, "padding formula assumes an odd kernel size"
    assert (W & (W - 1) == 0) and (Cout & (Cout - 1) == 0), \
        "lane-group butterfly reduction assumes W and Cout are powers of two"

    pad = (K - 1) * dilation // 2
    Hp, Wp = H + 2 * pad, W + 2 * pad
    WC = W * Cout
    Kraw = K * Wp * Cin
    Kc = ((Kraw + 127) // 128) * 128          # lane-pad the contraction axis

    # TODO(synk): cache the weight-side plumbing (block-Toeplitz einsum, gamma/beta
    # tiling) across calls when parameters are reused, and keep NHWC end-to-end if
    # the consumer allows, to trim the un-hidden XLA dispatches around the kernel.

    # ---- x staging: NHWC, zero-pad, fold K row taps into the contraction --------
    x = jnp.transpose(x_nchw, (0, 2, 3, 1)).astype(jnp.float32)
    xpad = jnp.pad(x, ((0, 0), (pad, pad), (pad, pad), (0, 0)))      # (N, Hp, Wp, Cin)
    rows = jnp.stack([xpad[:, kh * dilation: kh * dilation + H]
                      for kh in range(K)], axis=2)                   # (N, H, K, Wp, Cin)
    lhs = rows.reshape(N * H, Kraw)
    lhs = jnp.pad(lhs, ((0, 0), (0, Kc - Kraw))).astype(conv_dtype)  # (N*H, Kc)

    # ---- block-Toeplitz weights:
    # w_mat[kh*Wp*Cin + wp*Cin + ci, w*Cout + co] = weight[co, ci, kh, kw]
    #                                               iff wp == w + kw*dilation.
    w_hwio = jnp.transpose(weight, (2, 3, 1, 0)).astype(jnp.float32)  # (Kh, Kw, Cin, Cout)
    sel = (jnp.arange(Wp)[None, :, None]
           == jnp.arange(W)[None, None, :]
           + dilation * jnp.arange(K)[:, None, None]).astype(jnp.float32)  # (Kw, Wp, W)
    w_mat = jnp.einsum('kpw,hkcf->hpcwf', sel, w_hwio).reshape(Kraw, WC)
    w_mat = jnp.pad(w_mat, ((0, Kc - Kraw), (0, 0))).astype(conv_dtype)    # (Kc, WC)

    del bias  # exactly cancelled by the training-mode BN mean subtraction
    # TODO(synk): BatchNorm2d running_mean/running_var buffers are not computed or
    # returned; if needed, running_mean must include the conv bias (the cancellation
    # only holds for the normalized activation output).

    # gamma/beta pre-tiled to the lane-dense pattern, packed into one input.
    gb = jnp.stack([jnp.tile(gamma.astype(jnp.float32), W),
                    jnp.tile(beta.astype(jnp.float32), W)], axis=0)  # (2, WC)

    kernel = functools.partial(_fused_conv_bn_relu_kernel,
                               W=W, Cout=Cout, eps=eps,
                               inv_count=1.0 / float(N * H * W))

    out = pl.pallas_call(
        kernel,
        out_shape=jax.ShapeDtypeStruct((N * H, WC), jnp.float32),
        grid=(1,),
        in_specs=[
            pl.BlockSpec((N * H, Kc), lambda i: (0, 0)),   # stacked, shifted x
            pl.BlockSpec((Kc, WC), lambda i: (0, 0)),      # block-Toeplitz weights
            pl.BlockSpec((2, WC), lambda i: (0, 0)),       # gamma/beta (lane pattern)
        ],
        out_specs=pl.BlockSpec((N * H, WC), lambda i: (0, 0)),
        compiler_params=pltpu.CompilerParams(
            dimension_semantics=("arbitrary",),
        ),
    )(lhs, w_mat, gb)

    # lane-dense (N*H, W*Cout) -> NCHW
    return jnp.transpose(out.reshape(N, H, W, Cout), (0, 3, 1, 2))


def _reference(x, weight, bias, gamma, beta, *, dilation, eps=1e-5):
    """Pure-JAX reference of the PyTorch module forward (training-mode BN)."""
    K = weight.shape[-1]
    pad = (K - 1) * dilation // 2
    y = jax.lax.conv_general_dilated(
        x, weight, window_strides=(1, 1),
        padding=[(pad, pad), (pad, pad)],
        rhs_dilation=(dilation, dilation),
        dimension_numbers=('NCHW', 'OIHW', 'NCHW'))
    y = y + bias[None, :, None, None]
    mean = jnp.mean(y, axis=(0, 2, 3), keepdims=True)
    var = jnp.mean((y - mean) ** 2, axis=(0, 2, 3), keepdims=True)
    y = (y - mean) * jax.lax.rsqrt(var + eps)
    y = y * gamma[None, :, None, None] + beta[None, :, None, None]
    return jnp.maximum(y, 0.0)


if __name__ == "__main__":
    # module config: dilatedConv(in_channels=4, out_channels=8, kernel_size=3, dilation=2)
    N, Cin, H, W = 2, 4, 16, 16
    Cout, K, dil = 8, 3, 2

    key = jax.random.PRNGKey(0)
    kx, kw, kb = jax.random.split(key, 3)

    x = jax.random.normal(kx, (N, Cin, H, W), dtype=jnp.float32)

    # deterministic parameter init (PyTorch-like uniform bound for conv,
    # BatchNorm defaults gamma=1, beta=0)
    fan_in = Cin * K * K
    bound = 1.0 / (fan_in ** 0.5)
    weight = jax.random.uniform(kw, (Cout, Cin, K, K), jnp.float32, -bound, bound)
    bias = jax.random.uniform(kb, (Cout,), jnp.float32, -bound, bound)
    gamma = jnp.ones((Cout,), jnp.float32)
    beta = jnp.zeros((Cout,), jnp.float32)

    fwd = jax.jit(functools.partial(dilated_conv_forward, dilation=dil))
    y = fwd(x, weight, bias, gamma, beta)
    jax.block_until_ready(y)
    assert y.shape == (N, Cout, H, W), y.shape

    # sanity check vs pure-JAX f32 reference (bf16 MXU operands -> loose tolerance)
    y_ref = _reference(x, weight, bias, gamma, beta, dilation=dil)
    err = float(jnp.max(jnp.abs(y - y_ref)))
    assert err < 1e-1, f"max abs error vs reference: {err}"

    print("KERNEL_OK")
</pallas_src>

<mosaic_0001>
module attributes {stable_mosaic.version = 11 : i64} {
  func.func @_fused_conv_bn_relu_kernel(%arg0: i32, %arg1: memref<32x256xbf16, #tpu.memory_space<vmem>>, %arg2: memref<256x128xbf16, #tpu.memory_space<vmem>>, %arg3: memref<2x128xf32, #tpu.memory_space<vmem>>, %arg4: memref<32x128xf32, #tpu.memory_space<vmem>>) attributes {dimension_semantics = [#tpu.dimension_semantics<arbitrary>], iteration_bounds = array<i64: 1>, scalar_prefetch = 0 : i64, scratch_operands = 0 : i64, tpu.core_type = #tpu.core_type<tc>, window_params = [{pipeline_mode = #tpu.pipeline_mode<synchronous>, transform_indices = @transform_0, window_bounds = array<i64: 32, 256>}, {pipeline_mode = #tpu.pipeline_mode<synchronous>, transform_indices = @transform_1, window_bounds = array<i64: 256, 128>}, {pipeline_mode = #tpu.pipeline_mode<synchronous>, transform_indices = @transform_2, window_bounds = array<i64: 2, 128>}, {pipeline_mode = #tpu.pipeline_mode<synchronous>, transform_indices = @transform_3, window_bounds = array<i64: 32, 128>}]} {
    %c0 = arith.constant 0 : index
    %c0_0 = arith.constant 0 : index
    %0 = vector.load %arg1[%c0, %c0_0] : memref<32x256xbf16, #tpu.memory_space<vmem>>, vector<32x256xbf16>
    %c0_1 = arith.constant 0 : index
    %c0_2 = arith.constant 0 : index
    %1 = vector.load %arg2[%c0_1, %c0_2] : memref<256x128xbf16, #tpu.memory_space<vmem>>, vector<256x128xbf16>
    %cst = arith.constant dense<0.000000e+00> : vector<32x128xf32>
    %2 = tpu.matmul %0, %1, %cst {dimension_numbers = #tpu.dot_dimension_numbers<[1], [0], [0], [1], [0, 0, 1, 1], [], []>} : vector<32x256xbf16>, vector<256x128xbf16>, vector<32x128xf32> -> vector<32x128xf32>
    %cst_3 = arith.constant dense<0.000000e+00> : vector<128xf32>
    %3 = vector.multi_reduction <add>, %2, %cst_3 [0] : vector<32x128xf32> to vector<128xf32>
    %4 = vector.shape_cast %3 : vector<128xf32> to vector<1x128xf32>
    %c64_i32 = arith.constant 64 : i32
    %5 = tpu.dynamic_rotate %4 by %c64_i32 dim 1 : vector<1x128xf32>, i32 -> vector<1x128xf32>
    %6 = arith.addf %4, %5 : vector<1x128xf32>
    %c32_i32 = arith.constant 32 : i32
    %7 = tpu.dynamic_rotate %6 by %c32_i32 dim 1 : vector<1x128xf32>, i32 -> vector<1x128xf32>
    %8 = arith.addf %6, %7 : vector<1x128xf32>
    %c16_i32 = arith.constant 16 : i32
    %9 = tpu.dynamic_rotate %8 by %c16_i32 dim 1 : vector<1x128xf32>, i32 -> vector<1x128xf32>
    %10 = arith.addf %8, %9 : vector<1x128xf32>
    %c8_i32 = arith.constant 8 : i32
    %11 = tpu.dynamic_rotate %10 by %c8_i32 dim 1 : vector<1x128xf32>, i32 -> vector<1x128xf32>
    %12 = arith.addf %10, %11 : vector<1x128xf32>
    %cst_4 = arith.constant 0.001953125 : f32
    %13 = vector.broadcast %cst_4 : f32 to vector<1x128xf32>
    %14 = arith.mulf %12, %13 : vector<1x128xf32>
    %15 = vector.broadcast %14 : vector<1x128xf32> to vector<32x128xf32>
    %16 = arith.subf %2, %15 : vector<32x128xf32>
    %17 = arith.mulf %16, %16 : vector<32x128xf32>
    %cst_5 = arith.constant dense<0.000000e+00> : vector<128xf32>
    %18 = vector.multi_reduction <add>, %17, %cst_5 [0] : vector<32x128xf32> to vector<128xf32>
    %19 = vector.shape_cast %18 : vector<128xf32> to vector<1x128xf32>
    %c64_i32_6 = arith.constant 64 : i32
    %20 = tpu.dynamic_rotate %19 by %c64_i32_6 dim 1 : vector<1x128xf32>, i32 -> vector<1x128xf32>
    %21 = arith.addf %19, %20 : vector<1x128xf32>
    %c32_i32_7 = arith.constant 32 : i32
    %22 = tpu.dynamic_rotate %21 by %c32_i32_7 dim 1 : vector<1x128xf32>, i32 -> vector<1x128xf32>
    %23 = arith.addf %21, %22 : vector<1x128xf32>
    %c16_i32_8 = arith.constant 16 : i32
    %24 = tpu.dynamic_rotate %23 by %c16_i32_8 dim 1 : vector<1x128xf32>, i32 -> vector<1x128xf32>
    %25 = arith.addf %23, %24 : vector<1x128xf32>
    %c8_i32_9 = arith.constant 8 : i32
    %26 = tpu.dynamic_rotate %25 by %c8_i32_9 dim 1 : vector<1x128xf32>, i32 -> vector<1x128xf32>
    %27 = arith.addf %25, %26 : vector<1x128xf32>
    %cst_10 = arith.constant 0.001953125 : f32
    %28 = vector.broadcast %cst_10 : f32 to vector<1x128xf32>
    %29 = arith.mulf %27, %28 : vector<1x128xf32>
    %c0_11 = arith.constant 0 : index
    %c0_12 = arith.constant 0 : index
    %30 = vector.load %arg3[%c0_11, %c0_12] : memref<2x128xf32, #tpu.memory_space<vmem>>, vector<1x128xf32>
    %cst_13 = arith.constant 9.99999974E-6 : f32
    %31 = vector.broadcast %cst_13 : f32 to vector<1x128xf32>
    %32 = arith.addf %29, %31 : vector<1x128xf32>
    %33 = math.rsqrt %32 : vector<1x128xf32>
    %34 = arith.mulf %30, %33 : vector<1x128xf32>
    %c1 = arith.constant 1 : index
    %c0_14 = arith.constant 0 : index
    %35 = vector.load %arg3[%c1, %c0_14] : memref<2x128xf32, #tpu.memory_space<vmem>>, vector<1x128xf32>
    %36 = arith.mulf %14, %34 : vector<1x128xf32>
    %37 = arith.subf %35, %36 : vector<1x128xf32>
    %38 = vector.broadcast %34 : vector<1x128xf32> to vector<32x128xf32>
    %39 = arith.mulf %2, %38 : vector<32x128xf32>
    %40 = vector.broadcast %37 : vector<1x128xf32> to vector<32x128xf32>
    %41 = arith.addf %39, %40 : vector<32x128xf32>
    %cst_15 = arith.constant 0.000000e+00 : f32
    %42 = vector.broadcast %cst_15 : f32 to vector<32x128xf32>
    %43 = arith.maximumf %41, %42 : vector<32x128xf32>
    %c0_16 = arith.constant 0 : index
    %c0_17 = arith.constant 0 : index
    %44 = vector.load %arg4[%c0_16, %c0_17] : memref<32x128xf32, #tpu.memory_space<vmem>>, vector<32x128xf32>
    tpu.vector_store %arg4[%c0_16, %c0_17], %43 {strides = array<i32>} : memref<32x128xf32, #tpu.memory_space<vmem>>, vector<32x128xf32>,
    return
  }
  func.func @transform_0(%arg0: i32) -> (i32, i32) {
    %c0_i32 = arith.constant 0 : i32
    %c0_i32_0 = arith.constant 0 : i32
    %c0_i32_1 = arith.constant 0 : i32
    return %c0_i32, %c0_i32_0 : i32, i32
  }
  func.func @transform_1(%arg0: i32) -> (i32, i32) {
    %c0_i32 = arith.constant 0 : i32
    %c0_i32_0 = arith.constant 0 : i32
    %c0_i32_1 = arith.constant 0 : i32
    return %c0_i32, %c0_i32_0 : i32, i32
  }
  func.func @transform_2(%arg0: i32) -> (i32, i32) {
    %c0_i32 = arith.constant 0 : i32
    %c0_i32_0 = arith.constant 0 : i32
    %c0_i32_1 = arith.constant 0 : i32
    return %c0_i32, %c0_i32_0 : i32, i32
  }
  func.func @transform_3(%arg0: i32) -> (i32, i32) {
    %c0_i32 = arith.constant 0 : i32
    %c0_i32_0 = arith.constant 0 : i32
    %c0_i32_1 = arith.constant 0 : i32
    return %c0_i32, %c0_i32_0 : i32, i32
  }
}

</mosaic_0001>

<llo_original>
// kernel: tile.13
$region0: #{tile.13}
  #allocation0 [shape = 's32[1]{0}', space=sflag, size = 0x4, scoped, tag = 'scoped memory for tile.13']
  %s0 = inlined_call_operand.vmem [shape: f32[8], index: 0, kind: input, shape index: {}]
  %s1 = inlined_call_operand.vmem [shape: f32[16,8], index: 1, kind: output, shape index: {}]
  // Predicated region
  $region2: #{tile.13} parent=0 // pred_check
    _
  $region3: #{tile.13} parent=0 // pred_check_branch
    %3 = sbr.rel (0) target = $region5
  $region4: #{tile.13} parent=0 // pred_region
    _
  $region5: #{tile.13} parent=0 // pred_fallthru
    _
  %v4 = vld [vmem:[%s0] ss:$0 sm:$0xff]
  %5 = vst [vmem:[%s1] sm:$0xff] %v4
  %s6 = scalar_lea.vmem %s1, 8
  %7 = vst [vmem:[%s6] sm:$0xff] %v4

// kernel: tile.18
$region0: #{tile.18}
  %s0 = inlined_call_operand.vmem [shape: f32[16,8], index: 0, kind: input, shape index: {}]
  %s1 = inlined_call_operand.vmem [shape: f32[1,128], index: 1, kind: output, shape index: {}]
  $region1: #{tile.18} parent=0
    #allocation0 [shape = 'u8[4096]{0}', space=vmem, size = 0x1000, scoped, tag = 'scoped mem for output reshape']
    %v2 = vld [vmem:[%s0] sm:$0x1]
    %vm3 = vcmask 64512
    %4 = vst.msk [vmem:[#allocation0] sm:$0x1] %vm3, %v2
    %s5 = scalar_lea.vmem %s0, 15
    %v6 = vld [vmem:[%s5] sm:$0x1]
    %7 = vrot.lane.b32.xlu0 %v6, 120
    %v8 = vpop.permute.xlu0 %7
    %vm9 = vcmask 1048512
    %10 = vst.msk [vmem:[#allocation0] sm:$0x1] %vm9, %v8
    %s11 = scalar_lea.vmem %s0, 14
    %v12 = vld [vmem:[%s11] sm:$0x1]
    %13 = vrot.lane.b32.xlu0 %v12, 112
    %v14 = vpop.permute.xlu0 %13
    %vm15 = vcmask 982912
    %16 = vst.msk [vmem:[#allocation0] sm:$0x1] %vm15, %v14
    %s17 = scalar_lea.vmem %s0, 13
    %v18 = vld [vmem:[%s17] sm:$0x1]
    %19 = vrot.lane.b32.xlu0 %v18, 104
    %v20 = vpop.permute.xlu0 %19
    %vm21 = vcmask 917312
    %22 = vst.msk [vmem:[#allocation0] sm:$0x1] %vm21, %v20
    %s23 = scalar_lea.vmem %s0, 12
    %v24 = vld [vmem:[%s23] sm:$0x1]
    %25 = vrot.lane.b32.xlu0 %v24, 96
    %v26 = vpop.permute.xlu0 %25
    %vm27 = vcmask 851712
    %28 = vst.msk [vmem:[#allocation0] sm:$0x1] %vm27, %v26
    %s29 = scalar_lea.vmem %s0, 11
    %v30 = vld [vmem:[%s29] sm:$0x1]
    %31 = vrot.lane.b32.xlu0 %v30, 88
    %v32 = vpop.permute.xlu0 %31
    %vm33 = vcmask 786112
    %34 = vst.msk [vmem:[#allocation0] sm:$0x1] %vm33, %v32
    %s35 = scalar_lea.vmem %s0, 10
    %v36 = vld [vmem:[%s35] sm:$0x1]
    %37 = vrot.lane.b32.xlu0 %v36, 80
    %v38 = vpop.permute.xlu0 %37
    %vm39 = vcmask 720512
    %40 = vst.msk [vmem:[#allocation0] sm:$0x1] %vm39, %v38
    %s41 = scalar_lea.vmem %s0, 9
    %v42 = vld [vmem:[%s41] sm:$0x1]
    %43 = vrot.lane.b32.xlu0 %v42, 72
    %v44 = vpop.permute.xlu0 %43
    %vm45 = vcmask 654912
    %46 = vst.msk [vmem:[#allocation0] sm:$0x1] %vm45, %v44
    %s47 = scalar_lea.vmem %s0, 8
    %v48 = vld [vmem:[%s47] sm:$0x1]
    %49 = vrot.lane.b32.xlu0 %v48, 64
    %v50 = vpop.permute.xlu0 %49
    %vm51 = vcmask 589312
    %52 = vst.msk [vmem:[#allocation0] sm:$0x1] %vm51, %v50
    %s53 = scalar_lea.vmem %s0, 7
    %v54 = vld [vmem:[%s53] sm:$0x1]
    %55 = vrot.lane.b32.xlu0 %v54, 56
    %v56 = vpop.permute.xlu0 %55
    %vm57 = vcmask 523712
    %58 = vst.msk [vmem:[#allocation0] sm:$0x1] %vm57, %v56
    %s59 = scalar_lea.vmem %s0, 6
    %v60 = vld [vmem:[%s59] sm:$0x1]
    %61 = vrot.lane.b32.xlu0 %v60, 48
    %v62 = vpop.permute.xlu0 %61
    %vm63 = vcmask 458112
    %64 = vst.msk [vmem:[#allocation0] sm:$0x1] %vm63, %v62
    %s65 = scalar_lea.vmem %s0, 5
    %v66 = vld [vmem:[%s65] sm:$0x1]
    %67 = vrot.lane.b32.xlu0 %v66, 40
    %v68 = vpop.permute.xlu0 %67
    %vm69 = vcmask 392512
    %70 = vst.msk [vmem:[#allocation0] sm:$0x1] %vm69, %v68
    %s71 = scalar_lea.vmem %s0, 4
    %v72 = vld [vmem:[%s71] sm:$0x1]
    %73 = vrot.lane.b32.xlu0 %v72, 32
    %v74 = vpop.permute.xlu0 %73
    %vm75 = vcmask 326912
    %76 = vst.msk [vmem:[#allocation0] sm:$0x1] %vm75, %v74
    %s77 = scalar_lea.vmem %s0, 3
    %v78 = vld [vmem:[%s77] sm:$0x1]
    %79 = vrot.lane.b32.xlu0 %v78, 24
    %v80 = vpop.permute.xlu0 %79
    %vm81 = vcmask 261312
    %82 = vst.msk [vmem:[#allocation0] sm:$0x1] %vm81, %v80
    %s83 = scalar_lea.vmem %s0, 2
    %v84 = vld [vmem:[%s83] sm:$0x1]
    %85 = vrot.lane.b32.xlu0 %v84, 16
    %v86 = vpop.permute.xlu0 %85
    %vm87 = vcmask 195712
    %88 = vst.msk [vmem:[#allocation0] sm:$0x1] %vm87, %v86
    %s89 = scalar_lea.vmem %s0, 1
    %v90 = vld [vmem:[%s89] sm:$0x1]
    %91 = vrot.lane.b32.xlu0 %v90, 8
    %v92 = vpop.permute.xlu0 %91
    %vm93 = vcmask 130112
    %94 = vst.msk [vmem:[#allocation0] sm:$0x1] %vm93, %v92
    %s96 = sshll.u32 1, 1
    %s97 = ssub.s32 %s96, 1
    %v99 = vld [vmem:[#allocation0] sm:%s97]
    %s100 = sshll.u32 1, 1
    %s101 = ssub.s32 %s100, 1
    %102 = vst [vmem:[%s1] sm:%s101] %v99

// kernel: dilated_conv_forward.1
$region0: #{dilated_conv_forward.1}
  #allocation0 [shape = 'u32[]', space=smem, size = 0x4, offset = 0x4, fixed_abs, tag = 'smem constant byte address 0x4 - core index']
  #allocation1 [shape = 'u32[144,128]{1,0:T(1,128)}', space=vmem, size = 0x12000, scoped, tag = 'internal scratch']
  %s0 = inlined_call_operand.vmem [shape: bf16[32,256], index: 0, kind: input, shape index: {}]
  %s1 = inlined_call_operand.vmem [shape: bf16[256,128], index: 1, kind: input, shape index: {}]
  %s2 = inlined_call_operand.vmem [shape: f32[2,128], index: 2, kind: input, shape index: {}]
  %s3 = inlined_call_operand.vmem [shape: f32[32,128], index: 3, kind: output, shape index: {}]
  %s4 = sld [smem:[#allocation0]]
  $region22: #{dilated_conv_forward.1} parent=0
    _
  %s6 = ssub.s32 1, %s4
  %s7 = scalar_select 0, %s6, %s4
  // Predicated region
  $region2: #{dilated_conv_forward.1} parent=0 // pred_check
    _
  $region3: #{dilated_conv_forward.1} parent=0 // pred_check_branch
    %9 = sbr.rel (0) target = $region5
  $region4: #{dilated_conv_forward.1} parent=0 // pred_region
    _
  $region5: #{dilated_conv_forward.1} parent=0 // pred_fallthru
    _
  // Predicated region
  $region6: #{dilated_conv_forward.1} parent=0 // pred_check
    _
  $region7: #{dilated_conv_forward.1} parent=0 // pred_check_branch
    %11 = sbr.rel (0) target = $region9
  $region8: #{dilated_conv_forward.1} parent=0 // pred_region
    _
  $region9: #{dilated_conv_forward.1} parent=0 // pred_fallthru
    _
  // Predicated region
  $region10: #{dilated_conv_forward.1} parent=0 // pred_check
    _
  $region11: #{dilated_conv_forward.1} parent=0 // pred_check_branch
    %13 = sbr.rel (0) target = $region13
  $region12: #{dilated_conv_forward.1} parent=0 // pred_region
    _
  $region13: #{dilated_conv_forward.1} parent=0 // pred_fallthru
    _
  %v15 = vld [vmem:[%s0] sm:$0xff]
  %v16 = vld [vmem:[%s0 + $0x8] sm:$0xff]
  %v17 = vld [vmem:[%s0 + $0x10] sm:$0xff]
  %v18 = vld [vmem:[%s0 + $0x18] sm:$0xff]
  %v19 = vld [vmem:[%s1] sm:$0xf]
  %v20 = vld [vmem:[%s1 + $0x4] sm:$0xf]
  %v21 = vld [vmem:[%s1 + $0x8] sm:$0xf]
  %v22 = vld [vmem:[%s1 + $0xc] sm:$0xf]
  %v23 = vld [vmem:[%s1 + $0x10] sm:$0xf]
  %v24 = vld [vmem:[%s1 + $0x14] sm:$0xf]
  %v25 = vld [vmem:[%s1 + $0x18] sm:$0xf]
  %v26 = vld [vmem:[%s1 + $0x1c] sm:$0xf]
  %v27 = vld [vmem:[%s1 + $0x20] sm:$0xf]
  %v28 = vld [vmem:[%s1 + $0x24] sm:$0xf]
  %v29 = vld [vmem:[%s1 + $0x28] sm:$0xf]
  %v30 = vld [vmem:[%s1 + $0x2c] sm:$0xf]
  %v31 = vld [vmem:[%s1 + $0x30] sm:$0xf]
  %v32 = vld [vmem:[%s1 + $0x34] sm:$0xf]
  %v33 = vld [vmem:[%s1 + $0x38] sm:$0xf]
  %v34 = vld [vmem:[%s1 + $0x3c] sm:$0xf]
  %v35 = vld [vmem:[%s1 + $0x40] sm:$0xf]
  %v36 = vld [vmem:[%s1 + $0x44] sm:$0xf]
  %v37 = vld [vmem:[%s1 + $0x48] sm:$0xf]
  %v38 = vld [vmem:[%s1 + $0x4c] sm:$0xf]
  %v39 = vld [vmem:[%s1 + $0x50] sm:$0xf]
  %v40 = vld [vmem:[%s1 + $0x54] sm:$0xf]
  %v41 = vld [vmem:[%s1 + $0x58] sm:$0xf]
  %v42 = vld [vmem:[%s1 + $0x5c] sm:$0xf]
  %v43 = vld [vmem:[%s1 + $0x60] sm:$0xf]
  %v44 = vld [vmem:[%s1 + $0x64] sm:$0xf]
  %v45 = vld [vmem:[%s1 + $0x68] sm:$0xf]
  %v46 = vld [vmem:[%s1 + $0x6c] sm:$0xf]
  %v47 = vld [vmem:[%s1 + $0x70] sm:$0xf]
  %v48 = vld [vmem:[%s1 + $0x74] sm:$0xf]
  %v49 = vld [vmem:[%s1 + $0x78] sm:$0xf]
  %v50 = vld [vmem:[%s1 + $0x7c] sm:$0xf]
  %v55 = vunpack.c.l.b16 %v15
  %v56 = vunpack.c.h.b16 %v15
  %v57 = vunpack.c.l.b16 %v16
  %v58 = vunpack.c.h.b16 %v16
  %v59 = vunpack.c.l.b16 %v17
  %v60 = vunpack.c.h.b16 %v17
  %v61 = vunpack.c.l.b16 %v18
  %v62 = vunpack.c.h.b16 %v18
  %v63 = vpack.c.b16 %v57, %v55
  %v64 = vpack.c.b16 %v58, %v56
  %v65 = vpack.c.b16 %v61, %v59
  %v66 = vpack.c.b16 %v62, %v60
  %v103 = vunpack.c.l.b16 %v19
  %v104 = vunpack.c.l.b16 %v20
  %v105 = vunpack.c.l.b16 %v21
  %v106 = vunpack.c.l.b16 %v22
  %v107 = vunpack.c.l.b16 %v23
  %v108 = vunpack.c.l.b16 %v24
  %v109 = vunpack.c.l.b16 %v25
  %v110 = vunpack.c.l.b16 %v26
  %v111 = vunpack.c.l.b16 %v27
  %v112 = vunpack.c.l.b16 %v28
  %v113 = vunpack.c.l.b16 %v29
  %v114 = vunpack.c.l.b16 %v30
  %v115 = vunpack.c.l.b16 %v31
  %v116 = vunpack.c.l.b16 %v32
  %v117 = vunpack.c.l.b16 %v33
  %v118 = vunpack.c.l.b16 %v34
  %v119 = vunpack.c.l.b16 %v35
  %v120 = vunpack.c.l.b16 %v36
  %v121 = vunpack.c.l.b16 %v37
  %v122 = vunpack.c.l.b16 %v38
  %v123 = vunpack.c.l.b16 %v39
  %v124 = vunpack.c.l.b16 %v40
  %v125 = vunpack.c.l.b16 %v41
  %v126 = vunpack.c.l.b16 %v42
  %v127 = vunpack.c.l.b16 %v43
  %v128 = vunpack.c.l.b16 %v44
  %v129 = vunpack.c.l.b16 %v45
  %v130 = vunpack.c.l.b16 %v46
  %v131 = vunpack.c.l.b16 %v47
  %v132 = vunpack.c.l.b16 %v48
  %v133 = vunpack.c.l.b16 %v49
  %v134 = vunpack.c.l.b16 %v50
  %v135 = vpack.c.b16 %v104, %v103
  %v136 = vpack.c.b16 %v106, %v105
  %v137 = vpack.c.b16 %v108, %v107
  %v138 = vpack.c.b16 %v110, %v109
  %v139 = vpack.c.b16 %v112, %v111
  %v140 = vpack.c.b16 %v114, %v113
  %v141 = vpack.c.b16 %v116, %v115
  %v142 = vpack.c.b16 %v118, %v117
  %v143 = vpack.c.b16 %v120, %v119
  %v144 = vpack.c.b16 %v122, %v121
  %v145 = vpack.c.b16 %v124, %v123
  %v146 = vpack.c.b16 %v126, %v125
  %v147 = vpack.c.b16 %v128, %v127
  %v148 = vpack.c.b16 %v130, %v129
  %v149 = vpack.c.b16 %v132, %v131
  %v150 = vpack.c.b16 %v134, %v133
  %167 = vmatprep.subr.bf16.mxu0 0
  %168 = vmatpush1.bf16.msra.mxu0 %v142
  %169 = vmatprep.subr.bf16.mxu0 0
  %170 = vmatpush1.bf16.msra.mxu0 %v141
  %171 = vmatprep.subr.bf16.mxu0 0
  %172 = vmatpush1.bf16.msra.mxu0 %v140
  %173 = vmatprep.subr.bf16.mxu0 0
  %174 = vmatpush1.bf16.msra.mxu0 %v139
  %175 = vmatprep.subr.bf16.mxu0 0
  %176 = vmatpush1.bf16.msra.mxu0 %v138
  %177 = vmatprep.subr.bf16.mxu0 0
  %178 = vmatpush1.bf16.msra.mxu0 %v137
  %179 = vmatprep.subr.bf16.mxu0 0
  %180 = vmatpush1.bf16.msra.mxu0 %v136
  %181 = vmatprep.subr.bf16.mxu0 0
  %182 = vmatpush1.bf16.msra.mxu0 %v135
  %183 = vmatprep.subr.bf16.mxu0 0
  %184 = vmatpush2.bf16.msra.mxu0 %v150
  %185 = vmatprep.subr.bf16.mxu0 0
  %186 = vmatpush2.bf16.msra.mxu0 %v149
  %187 = vmatprep.subr.bf16.mxu0 0
  %188 = vmatpush2.bf16.msra.mxu0 %v148
  %189 = vmatprep.subr.bf16.mxu0 0
  %190 = vmatpush2.bf16.msra.mxu0 %v147
  %191 = vmatprep.subr.bf16.mxu0 0
  %192 = vmatpush2.bf16.msra.mxu0 %v146
  %193 = vmatprep.subr.bf16.mxu0 0
  %194 = vmatpush2.bf16.msra.mxu0 %v145
  %195 = vmatprep.subr.bf16.mxu0 0
  %196 = vmatpush2.bf16.msra.mxu0 %v144
  %197 = vmatprep.subr.bf16.mxu0 0
  %198 = vmatpush2.bf16.msra.mxu0 %v143
  %199 = vmatprep.mubr.bf16.mxu0 %v64
  %200 = vmatmul.mubr.bf16.gmra.mxu0 %v63
  %v201 = vpop.f32.mrf.mxu0
  %v202 = vadd.f32 0.0, %v201
  %v203 = vpop.f32.mrf.mxu0
  %v204 = vpop.f32.mrf.mxu0
  %v205 = vadd.f32 0.0, %v204
  %v206 = vpop.f32.mrf.mxu0
  %207 = vmatprep.mubr.bf16.mxu0 %v66
  %208 = vmatmul.mubr.bf16.gmra.mxu0 %v65
  %v209 = vpop.f32.mrf.mxu0
  %v210 = vadd.f32 0.0, %v209
  %v211 = vpop.f32.mrf.mxu0
  %v212 = vpop.f32.mrf.mxu0
  %v213 = vadd.f32 0.0, %v212
  %v214 = vpop.f32.mrf.mxu0
  %215 = vdwg.mxu0
  %v216 = vadd.f32 %v202, %v205
  %v217 = vadd.f32 %v216, %v210
  %v218 = vadd.f32 %v217, %v213
  %v219 = vrot.slane %v218, 4
  %v220 = vadd.f32 %v218, %v219
  %v221 = vrot.slane %v220, 2
  %v222 = vadd.f32 %v220, %v221
  %v223 = vrot.slane %v222, 1
  %v224 = vadd.f32 %v222, %v223
  %225 = vrot.lane.b32.xlu0 %v224, 64
  %v226 = vpop.permute.xlu0 %225
  %v227 = vadd.f32 %v224, %v226
  %228 = vrot.lane.b32.xlu0 %v227, 32
  %v229 = vpop.permute.xlu0 %228
  %v230 = vadd.f32 %v227, %v229
  %231 = vrot.lane.b32.xlu0 %v230, 16
  %v232 = vpop.permute.xlu0 %231
  %v233 = vadd.f32 %v230, %v232
  %234 = vrot.lane.b32.xlu0 %v233, 8
  %v235 = vpop.permute.xlu0 %234
  %v236 = vadd.f32 %v233, %v235
  %v237 = vmul.f32 %v236, 0.001953125
  %v238 = vlaneseq
  %v239 = vshrl.u32 %v238, 7
  %v240 = vsub.s32 0, %v239
  %v241 = vrot.slane %v237, %v240
  %v242 = vsub.f32 %v202, %v241
  %v243 = vsub.f32 %v205, %v241
  %v244 = vsub.f32 %v210, %v241
  %v245 = vsub.f32 %v213, %v241
  %v246 = vmul.f32 %v242, %v242
  %v247 = vmul.f32 %v243, %v243
  %v248 = vmul.f32 %v244, %v244
  %v249 = vmul.f32 %v245, %v245
  %v250 = vadd.f32 %v246, %v247
  %v251 = vadd.f32 %v250, %v248
  %v252 = vadd.f32 %v251, %v249
  %v253 = vrot.slane %v252, 4
  %v254 = vadd.f32 %v252, %v253
  %v255 = vrot.slane %v254, 2
  %v256 = vadd.f32 %v254, %v255
  %v257 = vrot.slane %v256, 1
  %v258 = vadd.f32 %v256, %v257
  %259 = vrot.lane.b32.xlu0 %v258, 64
  %v260 = vpop.permute.xlu0 %259
  %v261 = vadd.f32 %v258, %v260
  %262 = vrot.lane.b32.xlu0 %v261, 32
  %v263 = vpop.permute.xlu0 %262
  %v264 = vadd.f32 %v261, %v263
  %265 = vrot.lane.b32.xlu0 %v264, 16
  %v266 = vpop.permute.xlu0 %265
  %v267 = vadd.f32 %v264, %v266
  %268 = vrot.lane.b32.xlu0 %v267, 8
  %v269 = vpop.permute.xlu0 %268
  %v270 = vadd.f32 %v267, %v269
  %v271 = vmul.f32 %v270, 0.001953125
  %v272 = vld [vmem:[%s2] sm:$0x1]
  %v273 = vadd.f32 %v271, 1e-05
  %v274 = vrsqrt.pop %v273
  %v275 = vmul.f32 %v272, %v274
  %v276 = vld [vmem:[%s2 + $0x1] sm:$0x1]
  %v277 = vmul.f32 %v237, %v275
  %v278 = vsub.f32 %v276, %v277
  %v279 = vlaneseq
  %v280 = vshrl.u32 %v279, 7
  %v281 = vsub.s32 0, %v280
  %v282 = vrot.slane %v275, %v281
  %v283 = vmul.f32 %v202, %v282
  %v284 = vmul.f32 %v205, %v282
  %v285 = vmul.f32 %v210, %v282
  %v286 = vmul.f32 %v213, %v282
  %v287 = vlaneseq
  %v288 = vshrl.u32 %v287, 7
  %v289 = vsub.s32 0, %v288
  %v290 = vrot.slane %v278, %v289
  %v291 = vadd.f32 %v283, %v290
  %v292 = vadd.f32 %v284, %v290
  %v293 = vadd.f32 %v285, %v290
  %v294 = vadd.f32 %v286, %v290
  %v295 = vmax.f32 %v291, 0.0
  %v296 = vmax.f32 %v292, 0.0
  %v297 = vmax.f32 %v293, 0.0
  %v298 = vmax.f32 %v294, 0.0
  %299 = vst [vmem:[%s3] sm:$0xff] %v295
  %300 = vst [vmem:[%s3 + $0x8] sm:$0xff] %v296
  %301 = vst [vmem:[%s3 + $0x10] sm:$0xff] %v297
  %302 = vst [vmem:[%s3 + $0x18] sm:$0xff] %v298
  // Predicated region
  $region14: #{dilated_conv_forward.1} parent=0 // pred_check
    _
  $region15: #{dilated_conv_forward.1} parent=0 // pred_check_branch
    %304 = sbr.rel (0) target = $region17
  $region16: #{dilated_conv_forward.1} parent=0 // pred_region
    _
  $region17: #{dilated_conv_forward.1} parent=0 // pred_fallthru
    _
  // Predicated region
  $region18: #{dilated_conv_forward.1} parent=0 // pred_check
    _
  $region19: #{dilated_conv_forward.1} parent=0 // pred_check_branch
    %306 = sbr.rel (0) target = $region21
  $region20: #{dilated_conv_forward.1} parent=0 // pred_region
    _
  $region21: #{dilated_conv_forward.1} parent=0 // pred_fallthru
    _

</llo_original>
